<compile_context>
chip_gen: v5e
topology: v5e:2x2
jax: 0.10.0
libtpu: 0.0.40
codegen_flags: <defaults>
</compile_context>

<pallas_src>
import functools

import jax
import jax.numpy as jnp
from jax.experimental import pallas as pl
from jax.experimental.pallas import tpu as pltpu

LN_EPS = 1e-5
H1 = 256
H2 = 128


def _round_up(a, m):
    return (a + m - 1) // m * m


def _layernorm(h, gamma, beta):
    # LayerNorm over the feature axis, eps=1e-5, elementwise affine (f32).
    # Variance via E[x^2] - mean^2: one reduction pass, no centered temporary.
    mu = jnp.mean(h, axis=-1, keepdims=True)
    ms = jnp.mean(h * h, axis=-1, keepdims=True)
    var = jnp.maximum(ms - mu * mu, 0.0)           # guard tiny cancellation
    inv = jax.lax.rsqrt(var + LN_EPS)
    return (h - mu) * inv * gamma + beta


def ppo_kernel(
    x_ref,            # (tb, d_in)           f32 (cast to mm dtype in-kernel)
    w1_ref, b1_ref,   # (d_in, 256) mm-dtype, (1, 256) f32
    g1_ref, be1_ref,  # (1, 256), (1, 256)   f32
    w2_ref, b2_ref,   # (256, 128) mm-dtype, (1, 128) f32
    g2_ref, be2_ref,  # (1, 128), (1, 128)   f32
    wh_ref, bh_ref,   # (128, head_w) mm-dtype, (1, head_w) f32 (fused heads)
    mask_ref,         # (1, head_w) f32: 1.0 on actor-logit lanes, 0 elsewhere
    out_ref,          # (tb, head_w) f32: [:, :out]=probs, [:, out]=value
):
    mm_dtype = w1_ref.dtype

    # ---- feature block 1: Linear(d_in, 256) -> LayerNorm(256) -> ReLU ----
    x = x_ref[...].astype(mm_dtype)
    h = jnp.dot(x, w1_ref[...], preferred_element_type=jnp.float32)
    h = h + b1_ref[...]
    h = _layernorm(h, g1_ref[...], be1_ref[...])
    h = jnp.maximum(h, 0.0)

    # ---- feature block 2: Linear(256, 128) -> LayerNorm(128) -> ReLU ----
    h = jnp.dot(h.astype(mm_dtype), w2_ref[...], preferred_element_type=jnp.float32)
    h = h + b2_ref[...]
    h = _layernorm(h, g2_ref[...], be2_ref[...])
    h = jnp.maximum(h, 0.0)

    # ---- fused heads: one lane-dense matmul. Lanes [0, out) = actor logits,
    #      lane `out` = critic value, remaining lanes are zero padding. ----
    fused = jnp.dot(h.astype(mm_dtype), wh_ref[...], preferred_element_type=jnp.float32)
    fused = fused + bh_ref[...]

    is_logit = mask_ref[...] > 0.0                  # (1, head_w) - broadcasts

    # numerically stable softmax restricted to the logit lanes (all f32)
    masked = jnp.where(is_logit, fused, jnp.float32(-1e30))
    m = jnp.max(masked, axis=-1, keepdims=True)
    e = jnp.exp(masked - m)                         # exactly 0 on non-logit lanes
    denom = jnp.sum(e, axis=-1, keepdims=True)
    probs = e * (1.0 / denom)                       # exact recip on (tb,1): sums to 1

    # probs on the logit lanes, raw critic value (and zeros) on the rest
    out_ref[...] = jnp.where(is_logit, probs, fused)


def prepare_params(params, mm_dtype=jnp.bfloat16):
    """One-time weight prep (run at init / after optimizer steps, NOT per call):
       - fuse actor (128,out) + critic (128,1) into one lane-dense (128,head_w) head,
       - cast matmul weights to `mm_dtype`,
       - build the (1, head_w) logit-lane mask.
    Returns (prep_dict, out_size)."""
    out_size = params["wa"].shape[1]
    h2 = params["w2"].shape[1]
    head_w = max(128, _round_up(out_size + 1, 128))

    wh = jnp.zeros((h2, head_w), jnp.float32)
    wh = wh.at[:, :out_size].set(params["wa"])
    wh = wh.at[:, out_size].set(params["wc"][:, 0])
    bh = jnp.zeros((1, head_w), jnp.float32)
    bh = bh.at[:, :out_size].set(params["ba"])
    bh = bh.at[:, out_size].set(params["bc"][:, 0])
    mask = (jnp.arange(head_w) < out_size).astype(jnp.float32)[None, :]

    prep = {
        "w1": params["w1"].astype(mm_dtype), "b1": params["b1"],
        "g1": params["g1"], "be1": params["be1"],
        "w2": params["w2"].astype(mm_dtype), "b2": params["b2"],
        "g2": params["g2"], "be2": params["be2"],
        "wh": wh.astype(mm_dtype), "bh": bh,
        "mask": mask,
    }
    return prep, out_size


@functools.partial(jax.jit, static_argnames=("out_size", "block_b", "core_parallel"))
def ppo_forward(x, prep, *, out_size, block_b=None, core_parallel=False):
    """Fused forward. `prep` comes from prepare_params(). Returns (probs, value)."""
    B, d_in = x.shape
    head_w = prep["wh"].shape[1]

    # --- batch tile: big tiles amortize the ~0.35 us/step pipeline overhead and
    #     fill the MXU's LHS rows; keep >=2 tiles when B allows so both v7x
    #     TensorCores can take work.  VMEM footprint stays far below the default
    #     scoped limit even at block_b=2048 (hidden widths are only 256/128).
    if block_b is None:
        bp = _round_up(B, 8)
        if bp >= 4096:
            block_b = 2048
        elif bp >= 256:
            block_b = min(2048, _round_up(bp // 2, 128))
        else:
            block_b = bp
    B_pad = _round_up(B, block_b)
    x_p = x if B_pad == B else jnp.pad(x, ((0, B_pad - B), (0, 0)))

    grid = (B_pad // block_b,)

    def batch_spec(feat):
        return pl.BlockSpec((block_b, feat), lambda i: (i, 0))

    def full_spec(shape):
        # Constant index_map: Pallas only DMAs these blocks once.
        return pl.BlockSpec(shape, lambda i: (0, 0))

    in_specs = [
        batch_spec(d_in),                                   # x, full-extent last dim
        full_spec(prep["w1"].shape), full_spec(prep["b1"].shape),
        full_spec(prep["g1"].shape), full_spec(prep["be1"].shape),
        full_spec(prep["w2"].shape), full_spec(prep["b2"].shape),
        full_spec(prep["g2"].shape), full_spec(prep["be2"].shape),
        full_spec(prep["wh"].shape), full_spec(prep["bh"].shape),
        full_spec(prep["mask"].shape),
    ]
    out_specs = batch_spec(head_w)
    out_shape = jax.ShapeDtypeStruct((B_pad, head_w), jnp.float32)

    # On v7x with >=2 batch tiles, core_parallel=True splits the grid across
    # both TensorCores; default off for single-TC chips / interpret mode.
    sem = (pltpu.CORE_PARALLEL,) if core_parallel else ("parallel",)

    fused_out = pl.pallas_call(
        ppo_kernel,
        grid=grid,
        in_specs=in_specs,
        out_specs=out_specs,
        out_shape=out_shape,
        compiler_params=pltpu.CompilerParams(dimension_semantics=sem),
    )(
        x_p,
        prep["w1"], prep["b1"], prep["g1"], prep["be1"],
        prep["w2"], prep["b2"], prep["g2"], prep["be2"],
        prep["wh"], prep["bh"], prep["mask"],
    )

    probs = fused_out[:B, :out_size]
    value = fused_out[:B, out_size:out_size + 1]
    return probs, value


def ppo_actor_critic(x, params, *, mm_dtype=jnp.bfloat16, block_b=None,
                     core_parallel=False):
    """Convenience one-shot API.  In a rollout loop, call prepare_params() once
    and reuse the result with ppo_forward()."""
    prep, out_size = prepare_params(params, mm_dtype=mm_dtype)
    return ppo_forward(x, prep, out_size=out_size, block_b=block_b,
                       core_parallel=core_parallel)


def init_params(key, input_size, output_size):
    """Deterministic PyTorch-style init (uniform +/- 1/sqrt(fan_in) for Linear,
    ones/zeros for LayerNorm). Weights stored as (in, out)."""
    ks = jax.random.split(key, 8)

    def linear(kw, kb, fan_in, fan_out):
        bound = 1.0 / jnp.sqrt(fan_in)
        w = jax.random.uniform(kw, (fan_in, fan_out), jnp.float32, -bound, bound)
        b = jax.random.uniform(kb, (1, fan_out), jnp.float32, -bound, bound)
        return w, b

    w1, b1 = linear(ks[0], ks[1], input_size, H1)
    w2, b2 = linear(ks[2], ks[3], H1, H2)
    wa, ba = linear(ks[4], ks[5], H2, output_size)
    wc, bc = linear(ks[6], ks[7], H2, 1)
    return {
        "w1": w1, "b1": b1,
        "g1": jnp.ones((1, H1), jnp.float32), "be1": jnp.zeros((1, H1), jnp.float32),
        "w2": w2, "b2": b2,
        "g2": jnp.ones((1, H2), jnp.float32), "be2": jnp.zeros((1, H2), jnp.float32),
        "wa": wa, "ba": ba,
        "wc": wc, "bc": bc,
    }


def reference(x, p):
    """Pure-JAX f32 reference of the PyTorch forward."""
    def ln(h, g, b):
        mu = jnp.mean(h, axis=-1, keepdims=True)
        var = jnp.mean((h - mu) ** 2, axis=-1, keepdims=True)
        return (h - mu) / jnp.sqrt(var + LN_EPS) * g + b

    h = jnp.maximum(ln(x @ p["w1"] + p["b1"], p["g1"], p["be1"]), 0.0)
    h = jnp.maximum(ln(h @ p["w2"] + p["b2"], p["g2"], p["be2"]), 0.0)
    logits = h @ p["wa"] + p["ba"]
    probs = jax.nn.softmax(logits, axis=-1)
    value = h @ p["wc"] + p["bc"]
    return probs, value


if __name__ == "__main__":
    key = jax.random.PRNGKey(0)
    kx, kp = jax.random.split(key)

    batch, input_size, output_size = 8, 32, 8
    x = jax.random.normal(kx, (batch, input_size), jnp.float32)
    params = init_params(kp, input_size, output_size)

    probs_ref, value_ref = reference(x, params)

    # default path: bf16 MXU inputs, f32 accumulation / LN / softmax
    prep_bf16, out_size = prepare_params(params, mm_dtype=jnp.bfloat16)
    probs, value = ppo_forward(x, prep_bf16, out_size=out_size)
    probs, value = jax.block_until_ready((probs, value))
    assert probs.shape == (batch, output_size) and value.shape == (batch, 1)
    # bf16 matmul inputs -> looser tolerances vs the f32 reference.
    assert jnp.allclose(probs, probs_ref, atol=5e-2, rtol=5e-2)
    assert jnp.allclose(value, value_ref, atol=5e-2, rtol=5e-2)
    # exact-reciprocal softmax: probs normalize to 1 within f32 rounding.
    assert jnp.allclose(jnp.sum(probs, axis=-1), 1.0, atol=1e-4)

    # exact-path sanity check (f32 matmuls): structure must match tightly
    prep_f32, _ = prepare_params(params, mm_dtype=jnp.float32)
    probs32, value32 = ppo_forward(x, prep_f32, out_size=out_size)
    probs32, value32 = jax.block_until_ready((probs32, value32))
    assert jnp.allclose(probs32, probs_ref, atol=1e-4, rtol=1e-4)
    assert jnp.allclose(value32, value_ref, atol=1e-4, rtol=1e-4)
    assert jnp.allclose(jnp.sum(probs32, axis=-1), 1.0, atol=1e-5)

    print("KERNEL_OK")
</pallas_src>

<mosaic_0001>
module attributes {stable_mosaic.version = 11 : i64} {
  func.func @ppo_kernel(%arg0: i32, %arg1: memref<8x32xf32, #tpu.memory_space<vmem>>, %arg2: memref<32x256xbf16, #tpu.memory_space<vmem>>, %arg3: memref<1x256xf32, #tpu.memory_space<vmem>>, %arg4: memref<1x256xf32, #tpu.memory_space<vmem>>, %arg5: memref<1x256xf32, #tpu.memory_space<vmem>>, %arg6: memref<256x128xbf16, #tpu.memory_space<vmem>>, %arg7: memref<1x128xf32, #tpu.memory_space<vmem>>, %arg8: memref<1x128xf32, #tpu.memory_space<vmem>>, %arg9: memref<1x128xf32, #tpu.memory_space<vmem>>, %arg10: memref<128x128xbf16, #tpu.memory_space<vmem>>, %arg11: memref<1x128xf32, #tpu.memory_space<vmem>>, %arg12: memref<1x128xf32, #tpu.memory_space<vmem>>, %arg13: memref<8x128xf32, #tpu.memory_space<vmem>>) attributes {dimension_semantics = [#tpu.dimension_semantics<parallel>], iteration_bounds = array<i64: 1>, scalar_prefetch = 0 : i64, scratch_operands = 0 : i64, tpu.core_type = #tpu.core_type<tc>, window_params = [{transform_indices = @transform_0, window_bounds = array<i64: 8, 32>}, {pipeline_mode = #tpu.pipeline_mode<synchronous>, transform_indices = @transform_1, window_bounds = array<i64: 32, 256>}, {pipeline_mode = #tpu.pipeline_mode<synchronous>, transform_indices = @transform_2, window_bounds = array<i64: 1, 256>}, {pipeline_mode = #tpu.pipeline_mode<synchronous>, transform_indices = @transform_3, window_bounds = array<i64: 1, 256>}, {pipeline_mode = #tpu.pipeline_mode<synchronous>, transform_indices = @transform_4, window_bounds = array<i64: 1, 256>}, {pipeline_mode = #tpu.pipeline_mode<synchronous>, transform_indices = @transform_5, window_bounds = array<i64: 256, 128>}, {pipeline_mode = #tpu.pipeline_mode<synchronous>, transform_indices = @transform_6, window_bounds = array<i64: 1, 128>}, {pipeline_mode = #tpu.pipeline_mode<synchronous>, transform_indices = @transform_7, window_bounds = array<i64: 1, 128>}, {pipeline_mode = #tpu.pipeline_mode<synchronous>, transform_indices = @transform_8, window_bounds = array<i64: 1, 128>}, {pipeline_mode = #tpu.pipeline_mode<synchronous>, transform_indices = @transform_9, window_bounds = array<i64: 128, 128>}, {pipeline_mode = #tpu.pipeline_mode<synchronous>, transform_indices = @transform_10, window_bounds = array<i64: 1, 128>}, {pipeline_mode = #tpu.pipeline_mode<synchronous>, transform_indices = @transform_11, window_bounds = array<i64: 1, 128>}, {transform_indices = @transform_12, window_bounds = array<i64: 8, 128>}]} {
    %c0 = arith.constant 0 : index
    %c0_0 = arith.constant 0 : index
    %0 = vector.load %arg1[%c0, %c0_0] : memref<8x32xf32, #tpu.memory_space<vmem>>, vector<8x32xf32>
    %1 = arith.truncf %0 : vector<8x32xf32> to vector<8x32xbf16>
    %c0_1 = arith.constant 0 : index
    %c0_2 = arith.constant 0 : index
    %2 = vector.load %arg2[%c0_1, %c0_2] : memref<32x256xbf16, #tpu.memory_space<vmem>>, vector<32x256xbf16>
    %cst = arith.constant dense<0.000000e+00> : vector<8x256xf32>
    %3 = tpu.matmul %1, %2, %cst {dimension_numbers = #tpu.dot_dimension_numbers<[1], [0], [0], [1], [0, 0, 1, 1], [], []>} : vector<8x32xbf16>, vector<32x256xbf16>, vector<8x256xf32> -> vector<8x256xf32>
    %c0_3 = arith.constant 0 : index
    %c0_4 = arith.constant 0 : index
    %4 = vector.load %arg3[%c0_3, %c0_4] : memref<1x256xf32, #tpu.memory_space<vmem>>, vector<1x256xf32>
    %5 = vector.broadcast %4 : vector<1x256xf32> to vector<8x256xf32>
    %6 = arith.addf %3, %5 : vector<8x256xf32>
    %c0_5 = arith.constant 0 : index
    %c0_6 = arith.constant 0 : index
    %7 = vector.load %arg4[%c0_5, %c0_6] : memref<1x256xf32, #tpu.memory_space<vmem>>, vector<1x256xf32>
    %c0_7 = arith.constant 0 : index
    %c0_8 = arith.constant 0 : index
    %8 = vector.load %arg5[%c0_7, %c0_8] : memref<1x256xf32, #tpu.memory_space<vmem>>, vector<1x256xf32>
    %cst_9 = arith.constant dense<0.000000e+00> : vector<8xf32>
    %9 = vector.multi_reduction <add>, %6, %cst_9 [1] : vector<8x256xf32> to vector<8xf32>
    %10 = vector.shape_cast %9 : vector<8xf32> to vector<8x1xf32>
    %cst_10 = arith.constant 2.560000e+02 : f32
    %11 = vector.broadcast %cst_10 : f32 to vector<8x1xf32>
    %12 = arith.divf %10, %11 : vector<8x1xf32>
    %13 = arith.mulf %6, %6 : vector<8x256xf32>
    %cst_11 = arith.constant dense<0.000000e+00> : vector<8xf32>
    %14 = vector.multi_reduction <add>, %13, %cst_11 [1] : vector<8x256xf32> to vector<8xf32>
    %15 = vector.shape_cast %14 : vector<8xf32> to vector<8x1xf32>
    %cst_12 = arith.constant 2.560000e+02 : f32
    %16 = vector.broadcast %cst_12 : f32 to vector<8x1xf32>
    %17 = arith.divf %15, %16 : vector<8x1xf32>
    %18 = arith.mulf %12, %12 : vector<8x1xf32>
    %19 = arith.subf %17, %18 : vector<8x1xf32>
    %cst_13 = arith.constant 0.000000e+00 : f32
    %20 = vector.broadcast %cst_13 : f32 to vector<8x1xf32>
    %21 = arith.maximumf %19, %20 : vector<8x1xf32>
    %cst_14 = arith.constant 9.99999974E-6 : f32
    %22 = vector.broadcast %cst_14 : f32 to vector<8x1xf32>
    %23 = arith.addf %21, %22 : vector<8x1xf32>
    %24 = math.rsqrt %23 : vector<8x1xf32>
    %25 = vector.broadcast %12 : vector<8x1xf32> to vector<8x256xf32>
    %26 = arith.subf %6, %25 : vector<8x256xf32>
    %27 = vector.broadcast %24 : vector<8x1xf32> to vector<8x256xf32>
    %28 = arith.mulf %26, %27 : vector<8x256xf32>
    %29 = vector.broadcast %7 : vector<1x256xf32> to vector<8x256xf32>
    %30 = arith.mulf %28, %29 : vector<8x256xf32>
    %31 = vector.broadcast %8 : vector<1x256xf32> to vector<8x256xf32>
    %32 = arith.addf %30, %31 : vector<8x256xf32>
    %cst_15 = arith.constant 0.000000e+00 : f32
    %33 = vector.broadcast %cst_15 : f32 to vector<8x256xf32>
    %34 = arith.maximumf %32, %33 : vector<8x256xf32>
    %35 = arith.truncf %34 : vector<8x256xf32> to vector<8x256xbf16>
    %c0_16 = arith.constant 0 : index
    %c0_17 = arith.constant 0 : index
    %36 = vector.load %arg6[%c0_16, %c0_17] : memref<256x128xbf16, #tpu.memory_space<vmem>>, vector<256x128xbf16>
    %cst_18 = arith.constant dense<0.000000e+00> : vector<8x128xf32>
    %37 = tpu.matmul %35, %36, %cst_18 {dimension_numbers = #tpu.dot_dimension_numbers<[1], [0], [0], [1], [0, 0, 1, 1], [], []>} : vector<8x256xbf16>, vector<256x128xbf16>, vector<8x128xf32> -> vector<8x128xf32>
    %c0_19 = arith.constant 0 : index
    %c0_20 = arith.constant 0 : index
    %38 = vector.load %arg7[%c0_19, %c0_20] : memref<1x128xf32, #tpu.memory_space<vmem>>, vector<1x128xf32>
    %39 = vector.broadcast %38 : vector<1x128xf32> to vector<8x128xf32>
    %40 = arith.addf %37, %39 : vector<8x128xf32>
    %c0_21 = arith.constant 0 : index
    %c0_22 = arith.constant 0 : index
    %41 = vector.load %arg8[%c0_21, %c0_22] : memref<1x128xf32, #tpu.memory_space<vmem>>, vector<1x128xf32>
    %c0_23 = arith.constant 0 : index
    %c0_24 = arith.constant 0 : index
    %42 = vector.load %arg9[%c0_23, %c0_24] : memref<1x128xf32, #tpu.memory_space<vmem>>, vector<1x128xf32>
    %cst_25 = arith.constant dense<0.000000e+00> : vector<8xf32>
    %43 = vector.multi_reduction <add>, %40, %cst_25 [1] : vector<8x128xf32> to vector<8xf32>
    %44 = vector.shape_cast %43 : vector<8xf32> to vector<8x1xf32>
    %cst_26 = arith.constant 1.280000e+02 : f32
    %45 = vector.broadcast %cst_26 : f32 to vector<8x1xf32>
    %46 = arith.divf %44, %45 : vector<8x1xf32>
    %47 = arith.mulf %40, %40 : vector<8x128xf32>
    %cst_27 = arith.constant dense<0.000000e+00> : vector<8xf32>
    %48 = vector.multi_reduction <add>, %47, %cst_27 [1] : vector<8x128xf32> to vector<8xf32>
    %49 = vector.shape_cast %48 : vector<8xf32> to vector<8x1xf32>
    %cst_28 = arith.constant 1.280000e+02 : f32
    %50 = vector.broadcast %cst_28 : f32 to vector<8x1xf32>
    %51 = arith.divf %49, %50 : vector<8x1xf32>
    %52 = arith.mulf %46, %46 : vector<8x1xf32>
    %53 = arith.subf %51, %52 : vector<8x1xf32>
    %cst_29 = arith.constant 0.000000e+00 : f32
    %54 = vector.broadcast %cst_29 : f32 to vector<8x1xf32>
    %55 = arith.maximumf %53, %54 : vector<8x1xf32>
    %cst_30 = arith.constant 9.99999974E-6 : f32
    %56 = vector.broadcast %cst_30 : f32 to vector<8x1xf32>
    %57 = arith.addf %55, %56 : vector<8x1xf32>
    %58 = math.rsqrt %57 : vector<8x1xf32>
    %59 = vector.broadcast %46 : vector<8x1xf32> to vector<8x128xf32>
    %60 = arith.subf %40, %59 : vector<8x128xf32>
    %61 = vector.broadcast %58 : vector<8x1xf32> to vector<8x128xf32>
    %62 = arith.mulf %60, %61 : vector<8x128xf32>
    %63 = vector.broadcast %41 : vector<1x128xf32> to vector<8x128xf32>
    %64 = arith.mulf %62, %63 : vector<8x128xf32>
    %65 = vector.broadcast %42 : vector<1x128xf32> to vector<8x128xf32>
    %66 = arith.addf %64, %65 : vector<8x128xf32>
    %cst_31 = arith.constant 0.000000e+00 : f32
    %67 = vector.broadcast %cst_31 : f32 to vector<8x128xf32>
    %68 = arith.maximumf %66, %67 : vector<8x128xf32>
    %69 = arith.truncf %68 : vector<8x128xf32> to vector<8x128xbf16>
    %c0_32 = arith.constant 0 : index
    %c0_33 = arith.constant 0 : index
    %70 = vector.load %arg10[%c0_32, %c0_33] : memref<128x128xbf16, #tpu.memory_space<vmem>>, vector<128x128xbf16>
    %cst_34 = arith.constant dense<0.000000e+00> : vector<8x128xf32>
    %71 = tpu.matmul %69, %70, %cst_34 {dimension_numbers = #tpu.dot_dimension_numbers<[1], [0], [0], [1], [0, 0, 1, 1], [], []>} : vector<8x128xbf16>, vector<128x128xbf16>, vector<8x128xf32> -> vector<8x128xf32>
    %c0_35 = arith.constant 0 : index
    %c0_36 = arith.constant 0 : index
    %72 = vector.load %arg11[%c0_35, %c0_36] : memref<1x128xf32, #tpu.memory_space<vmem>>, vector<1x128xf32>
    %73 = vector.broadcast %72 : vector<1x128xf32> to vector<8x128xf32>
    %74 = arith.addf %71, %73 : vector<8x128xf32>
    %c0_37 = arith.constant 0 : index
    %c0_38 = arith.constant 0 : index
    %75 = vector.load %arg12[%c0_37, %c0_38] : memref<1x128xf32, #tpu.memory_space<vmem>>, vector<1x128xf32>
    %cst_39 = arith.constant 0.000000e+00 : f32
    %76 = vector.broadcast %cst_39 : f32 to vector<1x128xf32>
    %77 = arith.cmpf ogt, %75, %76 : vector<1x128xf32>
    %cst_40 = arith.constant -1.000000e+30 : f32
    %78 = vector.shape_cast %77 : vector<1x128xi1> to vector<1x128xi1>
    %79 = vector.broadcast %78 : vector<1x128xi1> to vector<8x128xi1>
    %80 = vector.broadcast %cst_40 : f32 to vector<8x128xf32>
    %81 = arith.select %79, %74, %80 : vector<8x128xi1>, vector<8x128xf32>
    %cst_41 = arith.constant dense<0xFF800000> : vector<8xf32>
    %82 = vector.multi_reduction <maximumf>, %81, %cst_41 [1] : vector<8x128xf32> to vector<8xf32>
    %83 = vector.shape_cast %82 : vector<8xf32> to vector<8x1xf32>
    %84 = vector.broadcast %83 : vector<8x1xf32> to vector<8x128xf32>
    %85 = arith.subf %81, %84 : vector<8x128xf32>
    %86 = math.exp %85 : vector<8x128xf32>
    %cst_42 = arith.constant dense<0.000000e+00> : vector<8xf32>
    %87 = vector.multi_reduction <add>, %86, %cst_42 [1] : vector<8x128xf32> to vector<8xf32>
    %88 = vector.shape_cast %87 : vector<8xf32> to vector<8x1xf32>
    %cst_43 = arith.constant 1.000000e+00 : f32
    %89 = vector.broadcast %cst_43 : f32 to vector<8x1xf32>
    %90 = arith.divf %89, %88 : vector<8x1xf32>
    %91 = vector.broadcast %90 : vector<8x1xf32> to vector<8x128xf32>
    %92 = arith.mulf %86, %91 : vector<8x128xf32>
    %93 = vector.shape_cast %77 : vector<1x128xi1> to vector<1x128xi1>
    %94 = vector.broadcast %93 : vector<1x128xi1> to vector<8x128xi1>
    %95 = arith.select %94, %92, %74 : vector<8x128xi1>, vector<8x128xf32>
    %c0_44 = arith.constant 0 : index
    %c0_45 = arith.constant 0 : index
    %96 = vector.load %arg13[%c0_44, %c0_45] : memref<8x128xf32, #tpu.memory_space<vmem>>, vector<8x128xf32>
    tpu.vector_store %arg13[%c0_44, %c0_45], %95 {strides = array<i32>} : memref<8x128xf32, #tpu.memory_space<vmem>>, vector<8x128xf32>,
    return
  }
  func.func @transform_0(%arg0: i32) -> (i32, i32) {
    %c0_i32 = arith.constant 0 : i32
    %c0_i32_0 = arith.constant 0 : i32
    return %arg0, %c0_i32 : i32, i32
  }
  func.func @transform_1(%arg0: i32) -> (i32, i32) {
    %c0_i32 = arith.constant 0 : i32
    %c0_i32_0 = arith.constant 0 : i32
    %c0_i32_1 = arith.constant 0 : i32
    return %c0_i32, %c0_i32_0 : i32, i32
  }
  func.func @transform_2(%arg0: i32) -> (i32, i32) {
    %c0_i32 = arith.constant 0 : i32
    %c0_i32_0 = arith.constant 0 : i32
    %c0_i32_1 = arith.constant 0 : i32
    return %c0_i32, %c0_i32_0 : i32, i32
  }
  func.func @transform_3(%arg0: i32) -> (i32, i32) {
    %c0_i32 = arith.constant 0 : i32
    %c0_i32_0 = arith.constant 0 : i32
    %c0_i32_1 = arith.constant 0 : i32
    return %c0_i32, %c0_i32_0 : i32, i32
  }
  func.func @transform_4(%arg0: i32) -> (i32, i32) {
    %c0_i32 = arith.constant 0 : i32
    %c0_i32_0 = arith.constant 0 : i32
    %c0_i32_1 = arith.constant 0 : i32
    return %c0_i32, %c0_i32_0 : i32, i32
  }
  func.func @transform_5(%arg0: i32) -> (i32, i32) {
    %c0_i32 = arith.constant 0 : i32
    %c0_i32_0 = arith.constant 0 : i32
    %c0_i32_1 = arith.constant 0 : i32
    return %c0_i32, %c0_i32_0 : i32, i32
  }
  func.func @transform_6(%arg0: i32) -> (i32, i32) {
    %c0_i32 = arith.constant 0 : i32
    %c0_i32_0 = arith.constant 0 : i32
    %c0_i32_1 = arith.constant 0 : i32
    return %c0_i32, %c0_i32_0 : i32, i32
  }
  func.func @transform_7(%arg0: i32) -> (i32, i32) {
    %c0_i32 = arith.constant 0 : i32
    %c0_i32_0 = arith.constant 0 : i32
    %c0_i32_1 = arith.constant 0 : i32
    return %c0_i32, %c0_i32_0 : i32, i32
  }
  func.func @transform_8(%arg0: i32) -> (i32, i32) {
    %c0_i32 = arith.constant 0 : i32
    %c0_i32_0 = arith.constant 0 : i32
    %c0_i32_1 = arith.constant 0 : i32
    return %c0_i32, %c0_i32_0 : i32, i32
  }
  func.func @transform_9(%arg0: i32) -> (i32, i32) {
    %c0_i32 = arith.constant 0 : i32
    %c0_i32_0 = arith.constant 0 : i32
    %c0_i32_1 = arith.constant 0 : i32
    return %c0_i32, %c0_i32_0 : i32, i32
  }
  func.func @transform_10(%arg0: i32) -> (i32, i32) {
    %c0_i32 = arith.constant 0 : i32
    %c0_i32_0 = arith.constant 0 : i32
    %c0_i32_1 = arith.constant 0 : i32
    return %c0_i32, %c0_i32_0 : i32, i32
  }
  func.func @transform_11(%arg0: i32) -> (i32, i32) {
    %c0_i32 = arith.constant 0 : i32
    %c0_i32_0 = arith.constant 0 : i32
    %c0_i32_1 = arith.constant 0 : i32
    return %c0_i32, %c0_i32_0 : i32, i32
  }
  func.func @transform_12(%arg0: i32) -> (i32, i32) {
    %c0_i32 = arith.constant 0 : i32
    %c0_i32_0 = arith.constant 0 : i32
    return %arg0, %c0_i32 : i32, i32
  }
}

</mosaic_0001>

<llo_original>
// kernel: ppo_forward.1
$region0: #{ppo_forward.1}
  #allocation0 [shape = 'u32[]', space=smem, size = 0x4, offset = 0x4, fixed_abs, tag = 'smem constant byte address 0x4 - core index']
  #allocation1 [shape = 'u32[72,128]{1,0:T(1,128)}', space=vmem, size = 0x9000, scoped, tag = 'internal scratch']
  %s0 = inlined_call_operand.hbm [shape: f32[8,32], index: 0, kind: input, shape index: {}]
  %s1 = inlined_call_operand.hbm [shape: bf16[32,256], index: 1, kind: input, shape index: {}]
  %s2 = inlined_call_operand.hbm [shape: f32[1,256], index: 2, kind: input, shape index: {}]
  %s3 = inlined_call_operand.vmem [shape: f32[1,256], index: 3, kind: input, shape index: {}]
  %s4 = inlined_call_operand.hbm [shape: f32[1,256], index: 4, kind: input, shape index: {}]
  %s5 = inlined_call_operand.hbm [shape: bf16[256,128], index: 5, kind: input, shape index: {}]
  %s6 = inlined_call_operand.vmem [shape: f32[1,128], index: 6, kind: input, shape index: {}]
  %s7 = inlined_call_operand.vmem [shape: f32[1,128], index: 7, kind: input, shape index: {}]
  %s8 = inlined_call_operand.hbm [shape: f32[1,128], index: 8, kind: input, shape index: {}]
  %s9 = inlined_call_operand.hbm [shape: bf16[128,128], index: 9, kind: input, shape index: {}]
  %s10 = inlined_call_operand.hbm [shape: f32[1,128], index: 10, kind: input, shape index: {}]
  %s11 = inlined_call_operand.vmem [shape: f32[1,128], index: 11, kind: input, shape index: {}]
  %s12 = inlined_call_operand.vmem [shape: f32[8,128], index: 12, kind: output, shape index: {}]
  %s13 = sld [smem:[#allocation0]]
  $region90: #{ppo_forward.1} parent=0
    _
  %s15 = ssub.s32 1, %s13
  %s16 = scalar_select 0, %s15, %s13
  $region1: #{ppo_forward.1} parent=0
    #allocation2 [shape = 'u8[4096]{0}', space=vmem, size = 0x1000, scoped, tag = 'input window, operand 0, single buffered']
    #allocation3 [shape = 's32[1]{0}', space=sflag, size = 0x4, scoped, tag = 'scoped memory for ppo_forward.1']
    #allocation4 [shape = 'u8[16384]{0}', space=vmem, size = 0x4000, scoped, tag = 'input window, operand 1, single buffered']
    #allocation5 [shape = 's32[1]{0}', space=sflag, size = 0x4, scoped, tag = 'scoped memory for ppo_forward.1']
    #allocation6 [shape = 'u8[1024]{0}', space=vmem, size = 0x400, scoped, tag = 'input window, operand 2, single buffered']
    #allocation7 [shape = 'u8[1024]{0}', space=vmem, size = 0x400, scoped, tag = 'input window, operand 4, single buffered']
    #allocation8 [shape = 's32[1]{0}', space=sflag, size = 0x4, scoped, tag = 'scoped memory for ppo_forward.1']
    #allocation9 [shape = 'u8[65536]{0}', space=vmem, size = 0x10000, scoped, tag = 'input window, operand 5, single buffered']
    #allocation10 [shape = 'u8[512]{0}', space=vmem, size = 0x400, scoped, tag = 'input window, operand 8, single buffered']
    #allocation11 [shape = 's32[1]{0}', space=sflag, size = 0x4, scoped, tag = 'scoped memory for ppo_forward.1']
    #allocation12 [shape = 'u8[32768]{0}', space=vmem, size = 0x8000, scoped, tag = 'input window, operand 9, single buffered']
    #allocation13 [shape = 'u8[512]{0}', space=vmem, size = 0x400, scoped, tag = 'input window, operand 10, single buffered']
    #allocation14 [shape = 's32[1]{0}', space=sflag, size = 0x4, scoped, tag = 'scoped memory for ppo_forward.1']
    %17 = vsyncpa [#allocation3], 0
    %18 = vsyncpa [#allocation5], 0
    %19 = vsyncpa [#allocation8], 0
    %20 = vsyncpa [#allocation11], 0
    %21 = vsyncpa [#allocation14], 0
    // Predicated region
    $region2: #{ppo_forward.1} parent=1 // pred_check
      _
    $region3: #{ppo_forward.1} parent=1 // pred_check_branch
      %23 = sbr.rel (0) target = $region5
    $region4: #{ppo_forward.1} parent=1 // pred_region
      %25 = vsyncadd [#allocation3], 0
      %s27 = sshll.u32 %s0, 4
      %s28 = int_to_ptr.hbm [resolvable:$true] %s27
      %s29 = sshll.u32 [#allocation2], 4
      %s30 = int_to_ptr.vmem [resolvable:$true] %s29
      %32 = dma.hbm_to_vmem [thread:$0]  %s28, 128, %s30, [#allocation3]
    $region5: #{ppo_forward.1} parent=1 // pred_fallthru
      _
    // Predicated region
    $region6: #{ppo_forward.1} parent=1 // pred_check
      _
    $region7: #{ppo_forward.1} parent=1 // pred_check_branch
      %34 = sbr.rel (0) target = $region9
    $region8: #{ppo_forward.1} parent=1 // pred_region
      %36 = vsyncadd [#allocation5], 0
      %s37 = sshll.u32 %s1, 4
      %s38 = int_to_ptr.hbm [resolvable:$true] %s37
      %s39 = sshll.u32 [#allocation4], 4
      %s40 = int_to_ptr.vmem [resolvable:$true] %s39
      %45 = dma.hbm_to_vmem [thread:$0]  %s38, 512, %s40, [#allocation5], 128, 128, 8
    $region9: #{ppo_forward.1} parent=1 // pred_fallthru
      _
    // Predicated region
    $region10: #{ppo_forward.1} parent=1 // pred_check
      _
    $region11: #{ppo_forward.1} parent=1 // pred_check_branch
      %47 = sbr.rel (0) target = $region13
    $region12: #{ppo_forward.1} parent=1 // pred_region
      %49 = vsyncadd [#allocation5], 0
      %s51 = sshll.u32 %s2, 4
      %s52 = int_to_ptr.hbm [resolvable:$true] %s51
      %s53 = sshll.u32 [#allocation6], 4
      %s54 = int_to_ptr.vmem [resolvable:$true] %s53
      %56 = dma.hbm_to_vmem [thread:$0]  %s52, 32, %s54, [#allocation5]
    $region13: #{ppo_forward.1} parent=1 // pred_fallthru
      _
    // Predicated region
    $region14: #{ppo_forward.1} parent=1 // pred_check
      _
    $region15: #{ppo_forward.1} parent=1 // pred_check_branch
      %58 = sbr.rel (0) target = $region17
    $region16: #{ppo_forward.1} parent=1 // pred_region
      _
    $region17: #{ppo_forward.1} parent=1 // pred_fallthru
      _
    // Predicated region
    $region18: #{ppo_forward.1} parent=1 // pred_check
      _
    $region19: #{ppo_forward.1} parent=1 // pred_check_branch
      %60 = sbr.rel (0) target = $region21
    $region20: #{ppo_forward.1} parent=1 // pred_region
      %62 = vsyncadd [#allocation8], 0
      %s64 = sshll.u32 %s4, 4
      %s65 = int_to_ptr.hbm [resolvable:$true] %s64
      %s66 = sshll.u32 [#allocation7], 4
      %s67 = int_to_ptr.vmem [resolvable:$true] %s66
      %69 = dma.hbm_to_vmem [thread:$0]  %s65, 32, %s67, [#allocation8]
    $region21: #{ppo_forward.1} parent=1 // pred_fallthru
      _
    // Predicated region
    $region22: #{ppo_forward.1} parent=1 // pred_check
      _
    $region23: #{ppo_forward.1} parent=1 // pred_check_branch
      %71 = sbr.rel (0) target = $region25
    $region24: #{ppo_forward.1} parent=1 // pred_region
      %73 = vsyncadd [#allocation8], 0
      %s74 = sshll.u32 %s5, 4
      %s75 = int_to_ptr.hbm [resolvable:$true] %s74
      %s76 = sshll.u32 [#allocation9], 4
      %s77 = int_to_ptr.vmem [resolvable:$true] %s76
      %82 = dma.hbm_to_vmem [thread:$0]  %s75, 2048, %s77, [#allocation8], 64, 64, 4
    $region25: #{ppo_forward.1} parent=1 // pred_fallthru
      _
    // Predicated region
    $region26: #{ppo_forward.1} parent=1 // pred_check
      _
    $region27: #{ppo_forward.1} parent=1 // pred_check_branch
      %84 = sbr.rel (0) target = $region29
    $region28: #{ppo_forward.1} parent=1 // pred_region
      _
    $region29: #{ppo_forward.1} parent=1 // pred_fallthru
      _
    // Predicated region
    $region30: #{ppo_forward.1} parent=1 // pred_check
      _
    $region31: #{ppo_forward.1} parent=1 // pred_check_branch
      %86 = sbr.rel (0) target = $region33
    $region32: #{ppo_forward.1} parent=1 // pred_region
      _
    $region33: #{ppo_forward.1} parent=1 // pred_fallthru
      _
    // Predicated region
    $region34: #{ppo_forward.1} parent=1 // pred_check
      _
    $region35: #{ppo_forward.1} parent=1 // pred_check_branch
      %88 = sbr.rel (0) target = $region37
    $region36: #{ppo_forward.1} parent=1 // pred_region
      %90 = vsyncadd [#allocation11], 0
      %s92 = sshll.u32 %s8, 4
      %s93 = int_to_ptr.hbm [resolvable:$true] %s92
      %s94 = sshll.u32 [#allocation10], 4
      %s95 = int_to_ptr.vmem [resolvable:$true] %s94
      %97 = dma.hbm_to_vmem [thread:$0]  %s93, 16, %s95, [#allocation11]
    $region37: #{ppo_forward.1} parent=1 // pred_fallthru
      _
    // Predicated region
    $region38: #{ppo_forward.1} parent=1 // pred_check
      _
    $region39: #{ppo_forward.1} parent=1 // pred_check_branch
      %99 = sbr.rel (0) target = $region41
    $region40: #{ppo_forward.1} parent=1 // pred_region
      %101 = vsyncadd [#allocation11], 0
      %s102 = sshll.u32 %s9, 4
      %s103 = int_to_ptr.hbm [resolvable:$true] %s102
      %s104 = sshll.u32 [#allocation12], 4
      %s105 = int_to_ptr.vmem [resolvable:$true] %s104
      %110 = dma.hbm_to_vmem [thread:$0]  %s103, 1024, %s105, [#allocation11], 64, 64, 4
    $region41: #{ppo_forward.1} parent=1 // pred_fallthru
      _
    // Predicated region
    $region42: #{ppo_forward.1} parent=1 // pred_check
      _
    $region43: #{ppo_forward.1} parent=1 // pred_check_branch
      %112 = sbr.rel (0) target = $region45
    $region44: #{ppo_forward.1} parent=1 // pred_region
      %114 = vsyncadd [#allocation14], 0
      %s116 = sshll.u32 %s10, 4
      %s117 = int_to_ptr.hbm [resolvable:$true] %s116
      %s118 = sshll.u32 [#allocation13], 4
      %s119 = int_to_ptr.vmem [resolvable:$true] %s118
      %121 = dma.hbm_to_vmem [thread:$0]  %s117, 16, %s119, [#allocation14]
    $region45: #{ppo_forward.1} parent=1 // pred_fallthru
      _
    // Predicated region
    $region46: #{ppo_forward.1} parent=1 // pred_check
      _
    $region47: #{ppo_forward.1} parent=1 // pred_check_branch
      %123 = sbr.rel (0) target = $region49
    $region48: #{ppo_forward.1} parent=1 // pred_region
      _
    $region49: #{ppo_forward.1} parent=1 // pred_fallthru
      _
    // Predicated region
    $region50: #{ppo_forward.1} parent=1 // pred_check
      _
    $region51: #{ppo_forward.1} parent=1 // pred_check_branch
      %125 = sbr.rel (0) target = $region53
    $region52: #{ppo_forward.1} parent=1 // pred_region
      %127 = dma.done [#allocation3], 128
    $region53: #{ppo_forward.1} parent=1 // pred_fallthru
      _
    // Predicated region
    $region54: #{ppo_forward.1} parent=1 // pred_check
      _
    $region55: #{ppo_forward.1} parent=1 // pred_check_branch
      %129 = sbr.rel (0) target = $region57
    $region56: #{ppo_forward.1} parent=1 // pred_region
      %131 = dma.done [#allocation5], 512
    $region57: #{ppo_forward.1} parent=1 // pred_fallthru
      _
    // Predicated region
    $region58: #{ppo_forward.1} parent=1 // pred_check
      _
    $region59: #{ppo_forward.1} parent=1 // pred_check_branch
      %133 = sbr.rel (0) target = $region61
    $region60: #{ppo_forward.1} parent=1 // pred_region
      %135 = dma.done [#allocation5], 32
    $region61: #{ppo_forward.1} parent=1 // pred_fallthru
      _
    // Predicated region
    $region62: #{ppo_forward.1} parent=1 // pred_check
      _
    $region63: #{ppo_forward.1} parent=1 // pred_check_branch
      %137 = sbr.rel (0) target = $region65
    $region64: #{ppo_forward.1} parent=1 // pred_region
      %139 = dma.done [#allocation8], 32
    $region65: #{ppo_forward.1} parent=1 // pred_fallthru
      _
    // Predicated region
    $region66: #{ppo_forward.1} parent=1 // pred_check
      _
    $region67: #{ppo_forward.1} parent=1 // pred_check_branch
      %141 = sbr.rel (0) target = $region69
    $region68: #{ppo_forward.1} parent=1 // pred_region
      %143 = dma.done [#allocation8], 2048
    $region69: #{ppo_forward.1} parent=1 // pred_fallthru
      _
    // Predicated region
    $region70: #{ppo_forward.1} parent=1 // pred_check
      _
    $region71: #{ppo_forward.1} parent=1 // pred_check_branch
      %145 = sbr.rel (0) target = $region73
    $region72: #{ppo_forward.1} parent=1 // pred_region
      %147 = dma.done [#allocation11], 16
    $region73: #{ppo_forward.1} parent=1 // pred_fallthru
      _
    // Predicated region
    $region74: #{ppo_forward.1} parent=1 // pred_check
      _
    $region75: #{ppo_forward.1} parent=1 // pred_check_branch
      %149 = sbr.rel (0) target = $region77
    $region76: #{ppo_forward.1} parent=1 // pred_region
      %151 = dma.done [#allocation11], 1024
    $region77: #{ppo_forward.1} parent=1 // pred_fallthru
      _
    // Predicated region
    $region78: #{ppo_forward.1} parent=1 // pred_check
      _
    $region79: #{ppo_forward.1} parent=1 // pred_check_branch
      %153 = sbr.rel (0) target = $region81
    $region80: #{ppo_forward.1} parent=1 // pred_region
      %155 = dma.done [#allocation14], 16
    $region81: #{ppo_forward.1} parent=1 // pred_fallthru
      _
    %v157 = vld [vmem:[#allocation2] sm:$0xff]
    %v158 = vpack.c.bf16 %v157, %v157
    %v159 = vld [vmem:[#allocation4] sm:$0xff]
    %v160 = vld [vmem:[#allocation4 + $0x8] sm:$0xff]
    %v161 = vld [vmem:[#allocation4 + $0x10] sm:$0xff]
    %v162 = vld [vmem:[#allocation4 + $0x18] sm:$0xff]
    %v163 = vld [vmem:[#allocation6] sm:$0x3]
    %v165 = vperm.slane %v163, 0
    %v166 = vperm.slane %v163, 1
    %v173 = vunpack.c.l.b16 %v159
    %v174 = vunpack.c.h.b16 %v159
    %v175 = vunpack.c.l.b16 %v160
    %v176 = vunpack.c.h.b16 %v160
    %v177 = vunpack.c.l.b16 %v161
    %v178 = vunpack.c.h.b16 %v161
    %v179 = vunpack.c.l.b16 %v162
    %v180 = vunpack.c.h.b16 %v162
    %v181 = vpack.c.b16 %v175, %v173
    %v182 = vpack.c.b16 %v176, %v174
    %v183 = vpack.c.b16 %v179, %v177
    %v184 = vpack.c.b16 %v180, %v178
    %vm189 = vcmask 261120
    %v191 = vsel %vm189, %v158, 0
    %193 = vmatpush.bf16.msra.mxu0 0
    %194 = vmatpush.bf16.msra.mxu0 0
    %195 = vmatpush.bf16.msra.mxu0 0
    %196 = vmatpush.bf16.msra.mxu0 0
    %197 = vmatpush.bf16.msra.mxu0 0
    %198 = vmatpush.bf16.msra.mxu0 0
    %199 = vmatpush.bf16.msra.mxu0 %v183
    %200 = vmatpush.bf16.msra.mxu0 %v181
    %201 = vmatmul.bf16.gmra.mxu0 %v191
    %v202 = vpop.f32.mrf.mxu0
    %v203 = vadd.f32 %v165, %v202
    %v204 = vpop.f32.mrf.mxu0
    %205 = vdwg.mxu0
    %206 = vmatpush.bf16.msra.mxu0 0
    %207 = vmatpush.bf16.msra.mxu0 0
    %208 = vmatpush.bf16.msra.mxu0 0
    %209 = vmatpush.bf16.msra.mxu0 0
    %210 = vmatpush.bf16.msra.mxu0 0
    %211 = vmatpush.bf16.msra.mxu0 0
    %212 = vmatpush.bf16.msra.mxu0 %v184
    %213 = vmatpush.bf16.msra.mxu0 %v182
    %214 = vmatmul.bf16.gmra.mxu0 %v191
    %v215 = vpop.f32.mrf.mxu0
    %v216 = vadd.f32 %v166, %v215
    %v217 = vpop.f32.mrf.mxu0
    %218 = vdwg.mxu0
    %v219 = vld [vmem:[%s3] sm:$0x3]
    %v220 = vld [vmem:[#allocation7] sm:$0x3]
    %v221 = vadd.f32 %v203, %v216
    %222 = vadd.xlane.f32.xlu0 %v221
    %v223 = vpop.xlane.xlu0 %222
    %v224 = vrcp.pop 256.0
    %v225 = vmul.f32 256.0, %v224
    %v226 = vsub.f32 1.0, %v225
    %v227 = vmul.f32 %v224, %v226
    %v228 = vadd.f32 %v224, %v227
    %vm229 = vweird.f32 %v224
    %v230 = vsel %vm229, %v224, %v228
    %v231 = vmul.f32 %v223, %v230
    %v232 = vmul.f32 %v203, %v203
    %v233 = vmul.f32 %v216, %v216
    %v234 = vadd.f32 %v232, %v233
    %235 = vadd.xlane.f32.xlu0 %v234
    %v236 = vpop.xlane.xlu0 %235
    %v237 = vmul.f32 %v236, %v230
    %v238 = vmul.f32 %v231, %v231
    %v239 = vsub.f32 %v237, %v238
    %v240 = vmax.f32 %v239, 0.0
    %v241 = vadd.f32 %v240, 1e-05
    %v242 = vrsqrt.pop %v241
    %v243 = vmul.f32 %v242, %v241
    %v244 = vmul.f32 %v243, %v242
    %v245 = vmul.f32 0.5, %v244
    %v246 = vsub.f32 1.5, %v245
    %v247 = vmul.f32 %v242, %v246
    %vm248 = vweird.f32 %v241
    %vm249 = vweird.f32 %v242
    %vm250 = vmor %vm248, %vm249
    %v251 = vsel %vm250, %v242, %v247
    %v252 = vsub.f32 %v203, %v231
    %v253 = vsub.f32 %v216, %v231
    %v254 = vmul.f32 %v252, %v251
    %v255 = vmul.f32 %v253, %v251
    %v257 = vperm.slane %v219, 0
    %v258 = vperm.slane %v219, 1
    %v261 = vmul.f32 %v254, %v257
    %v262 = vmul.f32 %v255, %v258
    %v264 = vperm.slane %v220, 0
    %v265 = vperm.slane %v220, 1
    %v268 = vadd.f32 %v261, %v264
    %v269 = vadd.f32 %v262, %v265
    %v270 = vmax.f32 %v268, 0.0
    %v271 = vmax.f32 %v269, 0.0
    %v272 = vpack.c.bf16 %v270, %v270
    %v273 = vpack.c.bf16 %v271, %v271
    %v274 = vld [vmem:[#allocation9] sm:$0xf]
    %v275 = vld [vmem:[#allocation9 + $0x4] sm:$0xf]
    %v276 = vld [vmem:[#allocation9 + $0x8] sm:$0xf]
    %v277 = vld [vmem:[#allocation9 + $0xc] sm:$0xf]
    %v278 = vld [vmem:[#allocation9 + $0x10] sm:$0xf]
    %v279 = vld [vmem:[#allocation9 + $0x14] sm:$0xf]
    %v280 = vld [vmem:[#allocation9 + $0x18] sm:$0xf]
    %v281 = vld [vmem:[#allocation9 + $0x1c] sm:$0xf]
    %v282 = vld [vmem:[#allocation9 + $0x20] sm:$0xf]
    %v283 = vld [vmem:[#allocation9 + $0x24] sm:$0xf]
    %v284 = vld [vmem:[#allocation9 + $0x28] sm:$0xf]
    %v285 = vld [vmem:[#allocation9 + $0x2c] sm:$0xf]
    %v286 = vld [vmem:[#allocation9 + $0x30] sm:$0xf]
    %v287 = vld [vmem:[#allocation9 + $0x34] sm:$0xf]
    %v288 = vld [vmem:[#allocation9 + $0x38] sm:$0xf]
    %v289 = vld [vmem:[#allocation9 + $0x3c] sm:$0xf]
    %v290 = vld [vmem:[#allocation9 + $0x40] sm:$0xf]
    %v291 = vld [vmem:[#allocation9 + $0x44] sm:$0xf]
    %v292 = vld [vmem:[#allocation9 + $0x48] sm:$0xf]
    %v293 = vld [vmem:[#allocation9 + $0x4c] sm:$0xf]
    %v294 = vld [vmem:[#allocation9 + $0x50] sm:$0xf]
    %v295 = vld [vmem:[#allocation9 + $0x54] sm:$0xf]
    %v296 = vld [vmem:[#allocation9 + $0x58] sm:$0xf]
    %v297 = vld [vmem:[#allocation9 + $0x5c] sm:$0xf]
    %v298 = vld [vmem:[#allocation9 + $0x60] sm:$0xf]
    %v299 = vld [vmem:[#allocation9 + $0x64] sm:$0xf]
    %v300 = vld [vmem:[#allocation9 + $0x68] sm:$0xf]
    %v301 = vld [vmem:[#allocation9 + $0x6c] sm:$0xf]
    %v302 = vld [vmem:[#allocation9 + $0x70] sm:$0xf]
    %v303 = vld [vmem:[#allocation9 + $0x74] sm:$0xf]
    %v304 = vld [vmem:[#allocation9 + $0x78] sm:$0xf]
    %v305 = vld [vmem:[#allocation9 + $0x7c] sm:$0xf]
    %v306 = vld [vmem:[%s6] sm:$0x1]
    %v308 = vperm.slane %v306, 0
    %v342 = vunpack.c.l.b16 %v274
    %v343 = vunpack.c.l.b16 %v275
    %v344 = vunpack.c.l.b16 %v276
    %v345 = vunpack.c.l.b16 %v277
    %v346 = vunpack.c.l.b16 %v278
    %v347 = vunpack.c.l.b16 %v279
    %v348 = vunpack.c.l.b16 %v280
    %v349 = vunpack.c.l.b16 %v281
    %v350 = vunpack.c.l.b16 %v282
    %v351 = vunpack.c.l.b16 %v283
    %v352 = vunpack.c.l.b16 %v284
    %v353 = vunpack.c.l.b16 %v285
    %v354 = vunpack.c.l.b16 %v286
    %v355 = vunpack.c.l.b16 %v287
    %v356 = vunpack.c.l.b16 %v288
    %v357 = vunpack.c.l.b16 %v289
    %v358 = vunpack.c.l.b16 %v290
    %v359 = vunpack.c.l.b16 %v291
    %v360 = vunpack.c.l.b16 %v292
    %v361 = vunpack.c.l.b16 %v293
    %v362 = vunpack.c.l.b16 %v294
    %v363 = vunpack.c.l.b16 %v295
    %v364 = vunpack.c.l.b16 %v296
    %v365 = vunpack.c.l.b16 %v297
    %v366 = vunpack.c.l.b16 %v298
    %v367 = vunpack.c.l.b16 %v299
    %v368 = vunpack.c.l.b16 %v300
    %v369 = vunpack.c.l.b16 %v301
    %v370 = vunpack.c.l.b16 %v302
    %v371 = vunpack.c.l.b16 %v303
    %v372 = vunpack.c.l.b16 %v304
    %v373 = vunpack.c.l.b16 %v305
    %v374 = vpack.c.b16 %v343, %v342
    %v375 = vpack.c.b16 %v345, %v344
    %v376 = vpack.c.b16 %v347, %v346
    %v377 = vpack.c.b16 %v349, %v348
    %v378 = vpack.c.b16 %v351, %v350
    %v379 = vpack.c.b16 %v353, %v352
    %v380 = vpack.c.b16 %v355, %v354
    %v381 = vpack.c.b16 %v357, %v356
    %v382 = vpack.c.b16 %v359, %v358
    %v383 = vpack.c.b16 %v361, %v360
    %v384 = vpack.c.b16 %v363, %v362
    %v385 = vpack.c.b16 %v365, %v364
    %v386 = vpack.c.b16 %v367, %v366
    %v387 = vpack.c.b16 %v369, %v368
    %v388 = vpack.c.b16 %v371, %v370
    %v389 = vpack.c.b16 %v373, %v372
    %406 = vmatpush.bf16.msra.mxu0 %v381
    %407 = vmatpush.bf16.msra.mxu0 %v380
    %408 = vmatpush.bf16.msra.mxu0 %v379
    %409 = vmatpush.bf16.msra.mxu0 %v378
    %410 = vmatpush.bf16.msra.mxu0 %v377
    %411 = vmatpush.bf16.msra.mxu0 %v376
    %412 = vmatpush.bf16.msra.mxu0 %v375
    %413 = vmatpush.bf16.msra.mxu0 %v374
    %414 = vmatmul.bf16.gmra.mxu0 %v272
    %v415 = vpop.f32.mrf.mxu0
    %v416 = vadd.f32 %v308, %v415
    %v417 = vpop.f32.mrf.mxu0
    %418 = vdwg.mxu0
    %419 = vmatpush.bf16.msra.mxu0 %v389
    %420 = vmatpush.bf16.msra.mxu0 %v388
    %421 = vmatpush.bf16.msra.mxu0 %v387
    %422 = vmatpush.bf16.msra.mxu0 %v386
    %423 = vmatpush.bf16.msra.mxu0 %v385
    %424 = vmatpush.bf16.msra.mxu0 %v384
    %425 = vmatpush.bf16.msra.mxu0 %v383
    %426 = vmatpush.bf16.msra.mxu0 %v382
    %427 = vmatmul.bf16.gmra.mxu0 %v273
    %v428 = vpop.f32.mrf.mxu0
    %v429 = vadd.f32 %v416, %v428
    %v430 = vpop.f32.mrf.mxu0
    %431 = vdwg.mxu0
    %v432 = vld [vmem:[%s7] sm:$0x1]
    %v433 = vld [vmem:[#allocation10] sm:$0x1]
    %434 = vadd.xlane.f32.xlu0 %v429
    %v435 = vpop.xlane.xlu0 %434
    %v436 = vrcp.pop 128.0
    %v437 = vmul.f32 128.0, %v436
    %v438 = vsub.f32 1.0, %v437
    %v439 = vmul.f32 %v436, %v438
    %v440 = vadd.f32 %v436, %v439
    %vm441 = vweird.f32 %v436
    %v442 = vsel %vm441, %v436, %v440
    %v443 = vmul.f32 %v435, %v442
    %v444 = vmul.f32 %v429, %v429
    %445 = vadd.xlane.f32.xlu0 %v444
    %v446 = vpop.xlane.xlu0 %445
    %v447 = vmul.f32 %v446, %v442
    %v448 = vmul.f32 %v443, %v443
    %v449 = vsub.f32 %v447, %v448
    %v450 = vmax.f32 %v449, 0.0
    %v451 = vadd.f32 %v450, 1e-05
    %v452 = vrsqrt.pop %v451
    %v453 = vmul.f32 %v452, %v451
    %v454 = vmul.f32 %v453, %v452
    %v455 = vmul.f32 0.5, %v454
    %v456 = vsub.f32 1.5, %v455
    %v457 = vmul.f32 %v452, %v456
    %vm458 = vweird.f32 %v451
    %vm459 = vweird.f32 %v452
    %vm460 = vmor %vm458, %vm459
    %v461 = vsel %vm460, %v452, %v457
    %v462 = vsub.f32 %v429, %v443
    %v463 = vmul.f32 %v462, %v461
    %v465 = vperm.slane %v432, 0
    %v467 = vmul.f32 %v463, %v465
    %v469 = vperm.slane %v433, 0
    %v471 = vadd.f32 %v467, %v469
    %v472 = vmax.f32 %v471, 0.0
    %v473 = vpack.c.bf16 %v472, %v472
    %v474 = vld [vmem:[#allocation12] sm:$0xf]
    %v475 = vld [vmem:[#allocation12 + $0x4] sm:$0xf]
    %v476 = vld [vmem:[#allocation12 + $0x8] sm:$0xf]
    %v477 = vld [vmem:[#allocation12 + $0xc] sm:$0xf]
    %v478 = vld [vmem:[#allocation12 + $0x10] sm:$0xf]
    %v479 = vld [vmem:[#allocation12 + $0x14] sm:$0xf]
    %v480 = vld [vmem:[#allocation12 + $0x18] sm:$0xf]
    %v481 = vld [vmem:[#allocation12 + $0x1c] sm:$0xf]
    %v482 = vld [vmem:[#allocation12 + $0x20] sm:$0xf]
    %v483 = vld [vmem:[#allocation12 + $0x24] sm:$0xf]
    %v484 = vld [vmem:[#allocation12 + $0x28] sm:$0xf]
    %v485 = vld [vmem:[#allocation12 + $0x2c] sm:$0xf]
    %v486 = vld [vmem:[#allocation12 + $0x30] sm:$0xf]
    %v487 = vld [vmem:[#allocation12 + $0x34] sm:$0xf]
    %v488 = vld [vmem:[#allocation12 + $0x38] sm:$0xf]
    %v489 = vld [vmem:[#allocation12 + $0x3c] sm:$0xf]
    %v490 = vld [vmem:[#allocation13] sm:$0x1]
    %v492 = vperm.slane %v490, 0
    %v510 = vunpack.c.l.b16 %v474
    %v511 = vunpack.c.l.b16 %v475
    %v512 = vunpack.c.l.b16 %v476
    %v513 = vunpack.c.l.b16 %v477
    %v514 = vunpack.c.l.b16 %v478
    %v515 = vunpack.c.l.b16 %v479
    %v516 = vunpack.c.l.b16 %v480
    %v517 = vunpack.c.l.b16 %v481
    %v518 = vunpack.c.l.b16 %v482
    %v519 = vunpack.c.l.b16 %v483
    %v520 = vunpack.c.l.b16 %v484
    %v521 = vunpack.c.l.b16 %v485
    %v522 = vunpack.c.l.b16 %v486
    %v523 = vunpack.c.l.b16 %v487
    %v524 = vunpack.c.l.b16 %v488
    %v525 = vunpack.c.l.b16 %v489
    %v526 = vpack.c.b16 %v511, %v510
    %v527 = vpack.c.b16 %v513, %v512
    %v528 = vpack.c.b16 %v515, %v514
    %v529 = vpack.c.b16 %v517, %v516
    %v530 = vpack.c.b16 %v519, %v518
    %v531 = vpack.c.b16 %v521, %v520
    %v532 = vpack.c.b16 %v523, %v522
    %v533 = vpack.c.b16 %v525, %v524
    %542 = vmatpush.bf16.msra.mxu0 %v533
    %543 = vmatpush.bf16.msra.mxu0 %v532
    %544 = vmatpush.bf16.msra.mxu0 %v531
    %545 = vmatpush.bf16.msra.mxu0 %v530
    %546 = vmatpush.bf16.msra.mxu0 %v529
    %547 = vmatpush.bf16.msra.mxu0 %v528
    %548 = vmatpush.bf16.msra.mxu0 %v527
    %549 = vmatpush.bf16.msra.mxu0 %v526
    %550 = vmatmul.bf16.gmra.mxu0 %v473
    %v551 = vpop.f32.mrf.mxu0
    %v552 = vadd.f32 %v492, %v551
    %v553 = vpop.f32.mrf.mxu0
    %554 = vdwg.mxu0
    %v555 = vld [vmem:[%s11] sm:$0x1]
    %vm556 = vcmp.gt.f32.partialorder %v555, 0.0
    %v557 = vsel %vm556, 1, 0
    %v558 = vperm.slane %v557, 0
    %vm559 = vcmp.eq.s32.totalorder %v558, 1
    %v560 = vsel %vm559, %v552, -1e+30
    %561 = vmax.xlane.f32.xlu0 %v560
    %v562 = vpop.xlane.xlu0 %561
    %v563 = vsub.f32 %v560, %v562
    %v564 = vmul.f32 %v563, 1.442695
    %v565 = vpow.pop %v564
    %566 = vadd.xlane.f32.xlu0 %v565
    %v567 = vpop.xlane.xlu0 %566
    %v568 = vrcp.pop %v567
    %v569 = vmul.f32 %v567, %v568
    %v570 = vsub.f32 1.0, %v569
    %v571 = vmul.f32 %v568, %v570
    %v572 = vadd.f32 %v568, %v571
    %vm573 = vweird.f32 %v567
    %vm574 = vweird.f32 %v568
    %vm575 = vmor %vm573, %vm574
    %v576 = vsel %vm575, %v568, %v572
    %v577 = vand.u32 2147483647, %v567
    %vm578 = vcmp.eq.f32.partialorder %v577, 8.507059e+37
    %v579 = vand.u32 %v567, 2147483648
    %v580 = vor.u32 1.1754944e-38, %v579
    %v581 = vsel %vm578, %v580, %v576
    %v582 = vmul.f32 1.0, %v581
    %v583 = vmul.f32 %v565, %v582
    %v584 = vsel %vm559, %v583, %v552
    %585 = vst [vmem:[%s12] sm:$0xff] %v584
    // Predicated region
    $region82: #{ppo_forward.1} parent=1 // pred_check
      _
    $region83: #{ppo_forward.1} parent=1 // pred_check_branch
      %587 = sbr.rel (0) target = $region85
    $region84: #{ppo_forward.1} parent=1 // pred_region
      _
    $region85: #{ppo_forward.1} parent=1 // pred_fallthru
      _
    // Predicated region
    $region86: #{ppo_forward.1} parent=1 // pred_check
      _
    $region87: #{ppo_forward.1} parent=1 // pred_check_branch
      %589 = sbr.rel (0) target = $region89
    $region88: #{ppo_forward.1} parent=1 // pred_region
      _
    $region89: #{ppo_forward.1} parent=1 // pred_fallthru
      _
    %590 = vsyncpa [#allocation3], 1
    %591 = vsyncpa [#allocation5], 1
    %592 = vsyncpa [#allocation8], 1
    %593 = vsyncpa [#allocation11], 1
    %594 = vsyncpa [#allocation14], 1

</llo_original>
